<compile_context>
chip_gen: v6e
topology: v6e:2x2x1
jax: 0.10.0
libtpu: 0.0.40
codegen_flags: <defaults>
</compile_context>

<pallas_src>
import functools

import numpy as np

import jax
import jax.numpy as jnp
from jax.experimental import pallas as pl
from jax.experimental.pallas import tpu as pltpu

EPS = 1e-5


# ---------------------------------------------------------------------------
# Helpers
# ---------------------------------------------------------------------------
def _vmem_limit_bytes():
    """Per-generation scoped-VMEM limit (~3/4 of physical, capped)."""
    try:
        cap = int(pltpu.get_tpu_info().vmem_capacity_bytes)
    except Exception:
        cap = 64 * 1024 * 1024          # conservative fallback (safe on v7x too)
    return max(32 * 1024 * 1024, min((cap * 3) // 4, 112 * 1024 * 1024))


def _tap_masks(H, W):
    """(9, H*W) float32 validity mask per 3x3 tap (1 = inside the image,
    0 = would cross the implicit 'same' zero padding), taps in (dh, dw)
    row-major order."""
    hh, ww = np.meshgrid(np.arange(H), np.arange(W), indexing="ij")
    rows = []
    for dh in (-1, 0, 1):
        for dw in (-1, 0, 1):
            ok = ((hh + dh >= 0) & (hh + dh < H) &
                  (ww + dw >= 0) & (ww + dw < W))
            rows.append(ok.reshape(-1))
    return np.stack(rows).astype(np.float32)


def _pick_batch_block(N, c_max, hw, vmem_limit):
    """Images per grid step: largest divisor of N whose per-step footprint
    (double-buffered in/out blocks + bf16 patch scratch + constants) fits in
    half the scoped-VMEM budget, capped at a few thousand lanes."""
    if hw % 128 != 0:
        return N                        # full-array block keeps lane tiling legal
    budget = vmem_limit // 2
    best = 1
    for b in range(1, N + 1):
        if N % b:
            continue
        lanes = b * hw
        if b > 1 and lanes > 8192:      # diminishing returns past a few K lanes
            break
        fp = (2 * 2 * c_max * 4 * lanes     # double-buffered input + output blocks
              + 9 * c_max * lanes * 2       # bf16 im2col scratch
              + 9 * lanes * 4               # boundary mask
              + c_max * 9 * c_max * 2)      # weights
        if fp <= budget:
            best = b
    return best


# ---------------------------------------------------------------------------
# Kernels
# ---------------------------------------------------------------------------
def _conv_stats_kernel(*refs, roll_shifts, c_in, fuse_bn_relu):
    """[optional fused BN+ReLU] -> 3x3 'same' conv over a block of B images in
    channel-major (C, B*H*W) layout as ONE bf16 MXU matmul -> packed per-step
    sum / sum-of-squares of the f32 conv output (global batch-norm partials)."""
    if fuse_bn_relu:
        (x_ref, scale_ref, shift_ref, w_ref, mask_ref,
         y_ref, stats_ref, patch_ref) = refs
    else:
        x_ref, w_ref, mask_ref, y_ref, stats_ref, patch_ref = refs

    x = x_ref[...].astype(jnp.float32)                      # (c_in, B*hw)
    if fuse_bn_relu:
        # Fused BatchNorm (precomputed per-channel scale/shift) + ReLU.
        x = jnp.maximum(x * scale_ref[...] + shift_ref[...], 0.0)

    # im2col: nine lane-shifted taps.  'same'-padding zeroing and the bf16 cast
    # are folded into the single per-tap write; the (1, B*hw) mask row is
    # sublane-broadcast over channels in-kernel.  Wrap-around pixels (between
    # rows / between images in the block) are exactly the masked-out taps.
    for k, shift in enumerate(roll_shifts):
        t = x if shift == 0 else jnp.roll(x, shift=shift, axis=1)
        m = mask_ref[k:k + 1, :]                            # (1, B*hw)
        patch_ref[k * c_in:(k + 1) * c_in, :] = (t * m).astype(jnp.bfloat16)

    # Single MXU matmul: bf16 operands, f32 accumulation.
    acc = jnp.dot(w_ref[...], patch_ref[...],
                  preferred_element_type=jnp.float32)       # (c_out, B*hw)

    # Packed one-pass batch-norm partials for this step: [:, 0]=sum, [:, 1]=sumsq
    # (taken from the f32 accumulator, before the bf16 output cast).
    stats_ref[0, :, 0:1] = jnp.sum(acc, axis=1, keepdims=True)
    stats_ref[0, :, 1:2] = jnp.sum(acc * acc, axis=1, keepdims=True)

    y_ref[...] = acc.astype(y_ref.dtype)                    # lane-dense bf16 store


def _bn_relu_kernel(y_ref, scale_ref, shift_ref, o_ref):
    y = y_ref[...].astype(jnp.float32)
    o_ref[...] = jnp.maximum(y * scale_ref[...] + shift_ref[...],
                             0.0).astype(o_ref.dtype)


# ---------------------------------------------------------------------------
# pallas_call wrappers
# ---------------------------------------------------------------------------
def _conv_call(x, w2d, mask_blk, W_img, hw, block_imgs, vmem_limit,
               bn_scale=None, bn_shift=None):
    """3x3 'same' conv over (C_in, N*hw) channel-major pixels.
    Returns (conv_out bf16 (C_out, N*hw), packed stats (steps, C_out, 2))."""
    c_in, total = x.shape
    c_out = w2d.shape[0]
    lanes = block_imgs * hw
    n_steps = total // lanes
    fuse = bn_scale is not None

    # roll semantics: result[i] = x[(i - shift) % n]  =>  shift = -(dh*W + dw).
    roll_shifts = tuple(-(dh * W_img + dw)
                        for dh in (-1, 0, 1) for dw in (-1, 0, 1))
    kernel = functools.partial(_conv_stats_kernel, roll_shifts=roll_shifts,
                               c_in=c_in, fuse_bn_relu=fuse)

    inputs = [x]
    in_specs = [pl.BlockSpec((c_in, lanes), lambda n: (0, n))]
    if fuse:
        inputs += [bn_scale, bn_shift]
        in_specs += [pl.BlockSpec((c_in, 1), lambda n: (0, 0)),
                     pl.BlockSpec((c_in, 1), lambda n: (0, 0))]
    inputs += [w2d, mask_blk]
    in_specs += [pl.BlockSpec((c_out, 9 * c_in), lambda n: (0, 0)),
                 pl.BlockSpec((9, lanes), lambda n: (0, 0))]

    out_shape = (jax.ShapeDtypeStruct((c_out, total), jnp.bfloat16),
                 jax.ShapeDtypeStruct((n_steps, c_out, 2), jnp.float32))
    out_specs = (pl.BlockSpec((c_out, lanes), lambda n: (0, n)),
                 pl.BlockSpec((1, c_out, 2), lambda n: (n, 0, 0)))

    cost = pl.CostEstimate(
        flops=2 * total * 9 * c_in * c_out,
        transcendentals=0,
        bytes_accessed=(c_in * total * x.dtype.itemsize
                        + c_out * total * 2
                        + 9 * lanes * 4
                        + c_out * 9 * c_in * 2
                        + n_steps * c_out * 2 * 4))

    return pl.pallas_call(
        kernel,
        grid=(n_steps,),
        in_specs=in_specs,
        out_specs=out_specs,
        out_shape=out_shape,
        scratch_shapes=[pltpu.VMEM((9 * c_in, lanes), jnp.bfloat16)],
        compiler_params=pltpu.CompilerParams(
            dimension_semantics=("parallel",),
            vmem_limit_bytes=vmem_limit),
        cost_estimate=cost,
    )(*inputs)


def _bn_relu_call(y, scale, shift, hw, block_imgs, vmem_limit):
    c, total = y.shape
    lanes = block_imgs * hw
    n_steps = total // lanes
    return pl.pallas_call(
        _bn_relu_kernel,
        grid=(n_steps,),
        in_specs=[pl.BlockSpec((c, lanes), lambda n: (0, n)),
                  pl.BlockSpec((c, 1), lambda n: (0, 0)),
                  pl.BlockSpec((c, 1), lambda n: (0, 0))],
        out_specs=pl.BlockSpec((c, lanes), lambda n: (0, n)),
        out_shape=jax.ShapeDtypeStruct((c, total), jnp.float32),
        compiler_params=pltpu.CompilerParams(
            dimension_semantics=("parallel",),
            vmem_limit_bytes=vmem_limit),
        cost_estimate=pl.CostEstimate(
            flops=2 * c * total, transcendentals=0,
            bytes_accessed=c * total * (2 + 4)),
    )(y, scale, shift)


def _bn_scale_shift(stats, gamma, beta, count):
    """Global training-mode BatchNorm (biased variance) folded into per-channel
    scale/shift, reduced from the packed per-step partials (a tiny jnp op)."""
    sums = jnp.sum(stats[:, :, 0], axis=0)                  # (C,)
    ssqs = jnp.sum(stats[:, :, 1], axis=0)                  # (C,)
    mean = sums / count
    var = jnp.maximum(ssqs / count - mean * mean, 0.0)      # one-pass variance
    inv_std = jax.lax.rsqrt(var + EPS)
    scale = gamma.astype(jnp.float32) * inv_std
    shift = beta.astype(jnp.float32) - mean * scale
    return scale.reshape(-1, 1), shift.reshape(-1, 1)


def double_conv(x_nchw, w1_oihw, g1, b1, w2_oihw, g2, b2):
    N, c_in, H, W = x_nchw.shape
    c_out = w1_oihw.shape[0]
    hw = H * W

    vmem_limit = _vmem_limit_bytes()
    B = _pick_batch_block(N, max(c_in, c_out), hw, vmem_limit)

    # Channel-major flat-pixel layout (C, N*H*W): pixel axis on the 128 lanes,
    # one grid step = B images = one wide matmul.  Only the NCHW input and the
    # final output are transposed (tiny XLA ops); intermediates never move.
    x_cm = jnp.transpose(x_nchw, (1, 0, 2, 3)).reshape(c_in, N * hw)
    x_cm = x_cm.astype(jnp.float32)

    # Weights pre-reshaped to the im2col layout (C_out, 9*C_in), bf16 operands.
    w1_2d = jnp.transpose(w1_oihw, (0, 2, 3, 1)).reshape(c_out, 9 * c_in)
    w1_2d = w1_2d.astype(jnp.bfloat16)
    w2_2d = jnp.transpose(w2_oihw, (0, 2, 3, 1)).reshape(c_out, 9 * c_out)
    w2_2d = w2_2d.astype(jnp.bfloat16)

    # (9, B*hw) boundary mask, tiled once per image in a step; broadcast over
    # channels happens in-kernel.
    mask_blk = jnp.asarray(np.tile(_tap_masks(H, W), (1, B)))

    count = N * hw

    # conv1 (+ packed BN1 partial statistics); y1 stays bf16 in HBM.
    y1, st1 = _conv_call(x_cm, w1_2d, mask_blk, W, hw, B, vmem_limit)
    scale1, shift1 = _bn_scale_shift(st1, g1, b1, count)

    # BN1 + ReLU fused into conv2 (+ packed BN2 partial statistics).
    y2, st2 = _conv_call(y1, w2_2d, mask_blk, W, hw, B, vmem_limit,
                         bn_scale=scale1, bn_shift=shift1)
    scale2, shift2 = _bn_scale_shift(st2, g2, b2, count)

    # BN2 + ReLU -> f32 output, back to NCHW.
    out = _bn_relu_call(y2, scale2, shift2, hw, B, vmem_limit)   # (c_out, N*hw)
    return out.reshape(c_out, N, H, W).transpose(1, 0, 2, 3)


# ---------------------------------------------------------------------------
# Pure-JAX references (NCHW) for correctness checking
# ---------------------------------------------------------------------------
def reference_forward(x, w1, g1, b1, w2, g2, b2, *, matmul_dtype=jnp.float32,
                      bf16_intermediates=False):
    def conv(x, w):
        return jax.lax.conv_general_dilated(
            x.astype(matmul_dtype), w.astype(matmul_dtype),
            window_strides=(1, 1), padding=((1, 1), (1, 1)),
            dimension_numbers=("NCHW", "OIHW", "NCHW"),
            preferred_element_type=jnp.float32)

    def bn_relu(y, g, b):
        mean = jnp.mean(y, axis=(0, 2, 3))
        var = jnp.mean(y * y, axis=(0, 2, 3)) - mean * mean
        scale = g * jax.lax.rsqrt(jnp.maximum(var, 0.0) + EPS)
        shift = b - mean * scale
        if bf16_intermediates:
            y = y.astype(jnp.bfloat16).astype(jnp.float32)
        return jnp.maximum(
            y * scale.reshape(1, -1, 1, 1) + shift.reshape(1, -1, 1, 1), 0.0)

    h = bn_relu(conv(x, w1), g1, b1)
    return bn_relu(conv(h, w2), g2, b2)


if __name__ == "__main__":
    key = jax.random.PRNGKey(0)
    N, Cin, H, W = 2, 4, 16, 16
    Cout = 8

    k = jax.random.split(key, 7)
    x = jax.random.normal(k[0], (N, Cin, H, W), jnp.float32)
    # Conv weights in PyTorch OIHW layout; deterministic synthetic init.
    w1 = jax.random.normal(k[1], (Cout, Cin, 3, 3), jnp.float32) * 0.2
    w2 = jax.random.normal(k[2], (Cout, Cout, 3, 3), jnp.float32) * 0.2
    # BatchNorm affine params (non-trivial values to exercise the affine path).
    g1 = 1.0 + 0.1 * jax.random.normal(k[3], (Cout,), jnp.float32)
    b1 = 0.1 * jax.random.normal(k[4], (Cout,), jnp.float32)
    g2 = 1.0 + 0.1 * jax.random.normal(k[5], (Cout,), jnp.float32)
    b2 = 0.1 * jax.random.normal(k[6], (Cout,), jnp.float32)

    out = jax.block_until_ready(double_conv(x, w1, g1, b1, w2, g2, b2))
    assert out.shape == (N, Cout, H, W), out.shape
    assert bool(jnp.all(jnp.isfinite(out)))

    # Precision-matched reference (bf16 matmul operands, bf16-rounded
    # intermediates, f32 accumulation/statistics — same recipe as the kernel).
    # Max error tolerates a handful of one-ulp bf16 double-rounding flips;
    # mean error must be tiny.
    ref = jax.block_until_ready(reference_forward(
        x, w1, g1, b1, w2, g2, b2,
        matmul_dtype=jnp.bfloat16, bf16_intermediates=True))
    max_err = float(jnp.max(jnp.abs(out - ref)))
    mean_err = float(jnp.mean(jnp.abs(out - ref)))
    assert max_err < 1e-1, f"matched-precision max error too large: {max_err}"
    assert mean_err < 2e-3, f"matched-precision mean error too large: {mean_err}"

    # Loose sanity check against the full-f32 reference (bf16 rounding only).
    ref32 = jax.block_until_ready(reference_forward(
        x, w1, g1, b1, w2, g2, b2, matmul_dtype=jnp.float32))
    err32 = float(jnp.max(jnp.abs(out - ref32)))
    assert err32 < 3e-1, f"f32-reference error too large: {err32}"

    print("KERNEL_OK")
</pallas_src>

<mosaic_0001>
module attributes {stable_mosaic.version = 11 : i64} {
  func.func @_conv_stats_kernel(%arg0: i32, %arg1: memref<4x512xf32, #tpu.memory_space<vmem>>, %arg2: memref<8x36xbf16, #tpu.memory_space<vmem>>, %arg3: memref<9x512xf32, #tpu.memory_space<vmem>>, %arg4: memref<8x512xbf16, #tpu.memory_space<vmem>>, %arg5: memref<1x8x2xf32, #tpu.memory_space<vmem>>, %arg6: memref<36x512xbf16, #tpu.memory_space<vmem>>) attributes {dimension_semantics = [#tpu.dimension_semantics<parallel>], iteration_bounds = array<i64: 1>, scalar_prefetch = 0 : i64, scratch_operands = 1 : i64, tpu.core_type = #tpu.core_type<tc>, window_params = [{transform_indices = @transform_0, window_bounds = array<i64: 4, 512>}, {pipeline_mode = #tpu.pipeline_mode<synchronous>, transform_indices = @transform_1, window_bounds = array<i64: 8, 36>}, {pipeline_mode = #tpu.pipeline_mode<synchronous>, transform_indices = @transform_2, window_bounds = array<i64: 9, 512>}, {transform_indices = @transform_3, window_bounds = array<i64: 8, 512>}, {transform_indices = @transform_4, window_bounds = array<i64: 1, 8, 2>}]} {
    %c0 = arith.constant 0 : index
    %c0_0 = arith.constant 0 : index
    %0 = vector.load %arg1[%c0, %c0_0] : memref<4x512xf32, #tpu.memory_space<vmem>>, vector<4x512xf32>
    %1 = vector.extract_strided_slice %0 {offsets = [0, 495], sizes = [4, 17], strides = [1, 1]} : vector<4x512xf32> to vector<4x17xf32>
    %2 = vector.extract_strided_slice %0 {offsets = [0, 0], sizes = [4, 495], strides = [1, 1]} : vector<4x512xf32> to vector<4x495xf32>
    %3 = tpu.concatenate %1, %2 in 1 : vector<4x17xf32>, vector<4x495xf32> -> vector<4x512xf32>
    %c0_1 = arith.constant 0 : index
    %c0_2 = arith.constant 0 : index
    %4 = vector.load %arg3[%c0_1, %c0_2] : memref<9x512xf32, #tpu.memory_space<vmem>>, vector<1x512xf32>
    %5 = vector.broadcast %4 : vector<1x512xf32> to vector<4x512xf32>
    %6 = arith.mulf %3, %5 : vector<4x512xf32>
    %7 = arith.truncf %6 : vector<4x512xf32> to vector<4x512xbf16>
    %c0_3 = arith.constant 0 : index
    %c0_4 = arith.constant 0 : index
    %8 = vector.load %arg6[%c0_3, %c0_4] : memref<36x512xbf16, #tpu.memory_space<vmem>>, vector<4x512xbf16>
    tpu.vector_store %arg6[%c0_3, %c0_4], %7 {strides = array<i32>} : memref<36x512xbf16, #tpu.memory_space<vmem>>, vector<4x512xbf16>,
    %9 = vector.extract_strided_slice %0 {offsets = [0, 496], sizes = [4, 16], strides = [1, 1]} : vector<4x512xf32> to vector<4x16xf32>
    %10 = vector.extract_strided_slice %0 {offsets = [0, 0], sizes = [4, 496], strides = [1, 1]} : vector<4x512xf32> to vector<4x496xf32>
    %11 = tpu.concatenate %9, %10 in 1 : vector<4x16xf32>, vector<4x496xf32> -> vector<4x512xf32>
    %c1 = arith.constant 1 : index
    %c0_5 = arith.constant 0 : index
    %12 = vector.load %arg3[%c1, %c0_5] : memref<9x512xf32, #tpu.memory_space<vmem>>, vector<1x512xf32>
    %13 = vector.broadcast %12 : vector<1x512xf32> to vector<4x512xf32>
    %14 = arith.mulf %11, %13 : vector<4x512xf32>
    %15 = arith.truncf %14 : vector<4x512xf32> to vector<4x512xbf16>
    %c4 = arith.constant 4 : index
    %c0_6 = arith.constant 0 : index
    %16 = vector.load %arg6[%c4, %c0_6] : memref<36x512xbf16, #tpu.memory_space<vmem>>, vector<4x512xbf16>
    tpu.vector_store %arg6[%c4, %c0_6], %15 {strides = array<i32>} : memref<36x512xbf16, #tpu.memory_space<vmem>>, vector<4x512xbf16>,
    %17 = vector.extract_strided_slice %0 {offsets = [0, 497], sizes = [4, 15], strides = [1, 1]} : vector<4x512xf32> to vector<4x15xf32>
    %18 = vector.extract_strided_slice %0 {offsets = [0, 0], sizes = [4, 497], strides = [1, 1]} : vector<4x512xf32> to vector<4x497xf32>
    %19 = tpu.concatenate %17, %18 in 1 : vector<4x15xf32>, vector<4x497xf32> -> vector<4x512xf32>
    %c2 = arith.constant 2 : index
    %c0_7 = arith.constant 0 : index
    %20 = vector.load %arg3[%c2, %c0_7] : memref<9x512xf32, #tpu.memory_space<vmem>>, vector<1x512xf32>
    %21 = vector.broadcast %20 : vector<1x512xf32> to vector<4x512xf32>
    %22 = arith.mulf %19, %21 : vector<4x512xf32>
    %23 = arith.truncf %22 : vector<4x512xf32> to vector<4x512xbf16>
    %c8 = arith.constant 8 : index
    %c0_8 = arith.constant 0 : index
    %24 = vector.load %arg6[%c8, %c0_8] : memref<36x512xbf16, #tpu.memory_space<vmem>>, vector<4x512xbf16>
    tpu.vector_store %arg6[%c8, %c0_8], %23 {strides = array<i32>} : memref<36x512xbf16, #tpu.memory_space<vmem>>, vector<4x512xbf16>,
    %25 = vector.extract_strided_slice %0 {offsets = [0, 511], sizes = [4, 1], strides = [1, 1]} : vector<4x512xf32> to vector<4x1xf32>
    %26 = vector.extract_strided_slice %0 {offsets = [0, 0], sizes = [4, 511], strides = [1, 1]} : vector<4x512xf32> to vector<4x511xf32>
    %27 = tpu.concatenate %25, %26 in 1 : vector<4x1xf32>, vector<4x511xf32> -> vector<4x512xf32>
    %c3 = arith.constant 3 : index
    %c0_9 = arith.constant 0 : index
    %28 = vector.load %arg3[%c3, %c0_9] : memref<9x512xf32, #tpu.memory_space<vmem>>, vector<1x512xf32>
    %29 = vector.broadcast %28 : vector<1x512xf32> to vector<4x512xf32>
    %30 = arith.mulf %27, %29 : vector<4x512xf32>
    %31 = arith.truncf %30 : vector<4x512xf32> to vector<4x512xbf16>
    %c12 = arith.constant 12 : index
    %c0_10 = arith.constant 0 : index
    %32 = vector.load %arg6[%c12, %c0_10] : memref<36x512xbf16, #tpu.memory_space<vmem>>, vector<4x512xbf16>
    tpu.vector_store %arg6[%c12, %c0_10], %31 {strides = array<i32>} : memref<36x512xbf16, #tpu.memory_space<vmem>>, vector<4x512xbf16>,
    %c4_11 = arith.constant 4 : index
    %c0_12 = arith.constant 0 : index
    %33 = vector.load %arg3[%c4_11, %c0_12] : memref<9x512xf32, #tpu.memory_space<vmem>>, vector<1x512xf32>
    %34 = vector.broadcast %33 : vector<1x512xf32> to vector<4x512xf32>
    %35 = arith.mulf %0, %34 : vector<4x512xf32>
    %36 = arith.truncf %35 : vector<4x512xf32> to vector<4x512xbf16>
    %c16 = arith.constant 16 : index
    %c0_13 = arith.constant 0 : index
    %37 = vector.load %arg6[%c16, %c0_13] : memref<36x512xbf16, #tpu.memory_space<vmem>>, vector<4x512xbf16>
    tpu.vector_store %arg6[%c16, %c0_13], %36 {strides = array<i32>} : memref<36x512xbf16, #tpu.memory_space<vmem>>, vector<4x512xbf16>,
    %38 = vector.extract_strided_slice %0 {offsets = [0, 1], sizes = [4, 511], strides = [1, 1]} : vector<4x512xf32> to vector<4x511xf32>
    %39 = vector.extract_strided_slice %0 {offsets = [0, 0], sizes = [4, 1], strides = [1, 1]} : vector<4x512xf32> to vector<4x1xf32>
    %40 = tpu.concatenate %38, %39 in 1 : vector<4x511xf32>, vector<4x1xf32> -> vector<4x512xf32>
    %c5 = arith.constant 5 : index
    %c0_14 = arith.constant 0 : index
    %41 = vector.load %arg3[%c5, %c0_14] : memref<9x512xf32, #tpu.memory_space<vmem>>, vector<1x512xf32>
    %42 = vector.broadcast %41 : vector<1x512xf32> to vector<4x512xf32>
    %43 = arith.mulf %40, %42 : vector<4x512xf32>
    %44 = arith.truncf %43 : vector<4x512xf32> to vector<4x512xbf16>
    %c20 = arith.constant 20 : index
    %c0_15 = arith.constant 0 : index
    %45 = vector.load %arg6[%c20, %c0_15] : memref<36x512xbf16, #tpu.memory_space<vmem>>, vector<4x512xbf16>
    tpu.vector_store %arg6[%c20, %c0_15], %44 {strides = array<i32>} : memref<36x512xbf16, #tpu.memory_space<vmem>>, vector<4x512xbf16>,
    %46 = vector.extract_strided_slice %0 {offsets = [0, 15], sizes = [4, 497], strides = [1, 1]} : vector<4x512xf32> to vector<4x497xf32>
    %47 = vector.extract_strided_slice %0 {offsets = [0, 0], sizes = [4, 15], strides = [1, 1]} : vector<4x512xf32> to vector<4x15xf32>
    %48 = tpu.concatenate %46, %47 in 1 : vector<4x497xf32>, vector<4x15xf32> -> vector<4x512xf32>
    %c6 = arith.constant 6 : index
    %c0_16 = arith.constant 0 : index
    %49 = vector.load %arg3[%c6, %c0_16] : memref<9x512xf32, #tpu.memory_space<vmem>>, vector<1x512xf32>
    %50 = vector.broadcast %49 : vector<1x512xf32> to vector<4x512xf32>
    %51 = arith.mulf %48, %50 : vector<4x512xf32>
    %52 = arith.truncf %51 : vector<4x512xf32> to vector<4x512xbf16>
    %c24 = arith.constant 24 : index
    %c0_17 = arith.constant 0 : index
    %53 = vector.load %arg6[%c24, %c0_17] : memref<36x512xbf16, #tpu.memory_space<vmem>>, vector<4x512xbf16>
    tpu.vector_store %arg6[%c24, %c0_17], %52 {strides = array<i32>} : memref<36x512xbf16, #tpu.memory_space<vmem>>, vector<4x512xbf16>,
    %54 = vector.extract_strided_slice %0 {offsets = [0, 16], sizes = [4, 496], strides = [1, 1]} : vector<4x512xf32> to vector<4x496xf32>
    %55 = vector.extract_strided_slice %0 {offsets = [0, 0], sizes = [4, 16], strides = [1, 1]} : vector<4x512xf32> to vector<4x16xf32>
    %56 = tpu.concatenate %54, %55 in 1 : vector<4x496xf32>, vector<4x16xf32> -> vector<4x512xf32>
    %c7 = arith.constant 7 : index
    %c0_18 = arith.constant 0 : index
    %57 = vector.load %arg3[%c7, %c0_18] : memref<9x512xf32, #tpu.memory_space<vmem>>, vector<1x512xf32>
    %58 = vector.broadcast %57 : vector<1x512xf32> to vector<4x512xf32>
    %59 = arith.mulf %56, %58 : vector<4x512xf32>
    %60 = arith.truncf %59 : vector<4x512xf32> to vector<4x512xbf16>
    %c28 = arith.constant 28 : index
    %c0_19 = arith.constant 0 : index
    %61 = vector.load %arg6[%c28, %c0_19] : memref<36x512xbf16, #tpu.memory_space<vmem>>, vector<4x512xbf16>
    tpu.vector_store %arg6[%c28, %c0_19], %60 {strides = array<i32>} : memref<36x512xbf16, #tpu.memory_space<vmem>>, vector<4x512xbf16>,
    %62 = vector.extract_strided_slice %0 {offsets = [0, 17], sizes = [4, 495], strides = [1, 1]} : vector<4x512xf32> to vector<4x495xf32>
    %63 = vector.extract_strided_slice %0 {offsets = [0, 0], sizes = [4, 17], strides = [1, 1]} : vector<4x512xf32> to vector<4x17xf32>
    %64 = tpu.concatenate %62, %63 in 1 : vector<4x495xf32>, vector<4x17xf32> -> vector<4x512xf32>
    %c8_20 = arith.constant 8 : index
    %c0_21 = arith.constant 0 : index
    %65 = vector.load %arg3[%c8_20, %c0_21] : memref<9x512xf32, #tpu.memory_space<vmem>>, vector<1x512xf32>
    %66 = vector.broadcast %65 : vector<1x512xf32> to vector<4x512xf32>
    %67 = arith.mulf %64, %66 : vector<4x512xf32>
    %68 = arith.truncf %67 : vector<4x512xf32> to vector<4x512xbf16>
    %c32 = arith.constant 32 : index
    %c0_22 = arith.constant 0 : index
    %69 = vector.load %arg6[%c32, %c0_22] : memref<36x512xbf16, #tpu.memory_space<vmem>>, vector<4x512xbf16>
    tpu.vector_store %arg6[%c32, %c0_22], %68 {strides = array<i32>} : memref<36x512xbf16, #tpu.memory_space<vmem>>, vector<4x512xbf16>,
    %c0_23 = arith.constant 0 : index
    %c0_24 = arith.constant 0 : index
    %70 = vector.load %arg2[%c0_23, %c0_24] : memref<8x36xbf16, #tpu.memory_space<vmem>>, vector<8x36xbf16>
    %c0_25 = arith.constant 0 : index
    %c0_26 = arith.constant 0 : index
    %71 = vector.load %arg6[%c0_25, %c0_26] : memref<36x512xbf16, #tpu.memory_space<vmem>>, vector<36x512xbf16>
    %cst = arith.constant dense<0.000000e+00> : vector<8x512xf32>
    %72 = tpu.matmul %70, %71, %cst {dimension_numbers = #tpu.dot_dimension_numbers<[1], [0], [0], [1], [0, 0, 1, 1], [], []>} : vector<8x36xbf16>, vector<36x512xbf16>, vector<8x512xf32> -> vector<8x512xf32>
    %cst_27 = arith.constant dense<0.000000e+00> : vector<8xf32>
    %73 = vector.multi_reduction <add>, %72, %cst_27 [1] : vector<8x512xf32> to vector<8xf32>
    %74 = vector.shape_cast %73 : vector<8xf32> to vector<8x1xf32>
    %c0_28 = arith.constant 0 : index
    %c0_29 = arith.constant 0 : index
    %c0_30 = arith.constant 0 : index
    %75 = vector.load %arg5[%c0_28, %c0_29, %c0_30] : memref<1x8x2xf32, #tpu.memory_space<vmem>>, vector<1x8x1xf32>
    %76 = vector.shape_cast %75 : vector<1x8x1xf32> to vector<8x1xf32>
    %77 = vector.shape_cast %74 : vector<8x1xf32> to vector<1x8x1xf32>
    tpu.vector_store %arg5[%c0_28, %c0_29, %c0_30], %77 {strides = array<i32>} : memref<1x8x2xf32, #tpu.memory_space<vmem>>, vector<1x8x1xf32>,
    %78 = arith.mulf %72, %72 : vector<8x512xf32>
    %cst_31 = arith.constant dense<0.000000e+00> : vector<8xf32>
    %79 = vector.multi_reduction <add>, %78, %cst_31 [1] : vector<8x512xf32> to vector<8xf32>
    %80 = vector.shape_cast %79 : vector<8xf32> to vector<8x1xf32>
    %c0_32 = arith.constant 0 : index
    %c0_33 = arith.constant 0 : index
    %c1_34 = arith.constant 1 : index
    %81 = vector.load %arg5[%c0_32, %c0_33, %c1_34] : memref<1x8x2xf32, #tpu.memory_space<vmem>>, vector<1x8x1xf32>
    %82 = vector.shape_cast %81 : vector<1x8x1xf32> to vector<8x1xf32>
    %83 = vector.shape_cast %80 : vector<8x1xf32> to vector<1x8x1xf32>
    tpu.vector_store %arg5[%c0_32, %c0_33, %c1_34], %83 {strides = array<i32>} : memref<1x8x2xf32, #tpu.memory_space<vmem>>, vector<1x8x1xf32>,
    %84 = arith.truncf %72 : vector<8x512xf32> to vector<8x512xbf16>
    %c0_35 = arith.constant 0 : index
    %c0_36 = arith.constant 0 : index
    %85 = vector.load %arg4[%c0_35, %c0_36] : memref<8x512xbf16, #tpu.memory_space<vmem>>, vector<8x512xbf16>
    tpu.vector_store %arg4[%c0_35, %c0_36], %84 {strides = array<i32>} : memref<8x512xbf16, #tpu.memory_space<vmem>>, vector<8x512xbf16>,
    return
  }
  func.func @transform_0(%arg0: i32) -> (i32, i32) {
    %c0_i32 = arith.constant 0 : i32
    %c0_i32_0 = arith.constant 0 : i32
    return %c0_i32, %arg0 : i32, i32
  }
  func.func @transform_1(%arg0: i32) -> (i32, i32) {
    %c0_i32 = arith.constant 0 : i32
    %c0_i32_0 = arith.constant 0 : i32
    %c0_i32_1 = arith.constant 0 : i32
    return %c0_i32, %c0_i32_0 : i32, i32
  }
  func.func @transform_2(%arg0: i32) -> (i32, i32) {
    %c0_i32 = arith.constant 0 : i32
    %c0_i32_0 = arith.constant 0 : i32
    %c0_i32_1 = arith.constant 0 : i32
    return %c0_i32, %c0_i32_0 : i32, i32
  }
  func.func @transform_3(%arg0: i32) -> (i32, i32) {
    %c0_i32 = arith.constant 0 : i32
    %c0_i32_0 = arith.constant 0 : i32
    return %c0_i32, %arg0 : i32, i32
  }
  func.func @transform_4(%arg0: i32) -> (i32, i32, i32) {
    %c0_i32 = arith.constant 0 : i32
    %c0_i32_0 = arith.constant 0 : i32
    %c0_i32_1 = arith.constant 0 : i32
    return %arg0, %c0_i32, %c0_i32_0 : i32, i32, i32
  }
}

</mosaic_0001>

<llo_original>
// kernel: tpu_custom_call.1
$region0: #{tpu_custom_call.1}
  #allocation0 [shape = 'u32[]', space=smem, size = 0x4, offset = 0x4, fixed_abs, tag = 'smem constant byte address 0x4 - core index']
  #allocation1 [shape = 'u32[144,128]{1,0:T(1,128)}', space=vmem, size = 0x12000, scoped, tag = 'internal scratch']
  #allocation2 [shape = 'bf16[36,512]{1,0:T(8,128)(2,1)}', space=vmem, size = 0xa000, scoped, tag = 'scratch operand']
  %s0 = inlined_call_operand.hbm [shape: f32[4,512], index: 0, kind: input, shape index: {}]
  %s1 = inlined_call_operand.hbm [shape: bf16[8,36], index: 1, kind: input, shape index: {}]
  %s2 = inlined_call_operand.hbm [shape: f32[9,512], index: 2, kind: input, shape index: {}]
  %s3 = inlined_call_operand.hbm [shape: bf16[8,512], index: 3, kind: output, shape index: {0}]
  %s4 = inlined_call_operand.vmem [shape: f32[1,8,2], index: 4, kind: output, shape index: {1}]
  %5 = xla_tuple %s3, %s4
  %s6 = sld [smem:[#allocation0]]
  $region42: #{tpu_custom_call.1} parent=0
    _
  %s8 = ssub.s32 1, %s6
  %s9 = scalar_select 0, %s8, %s6
  $region1: #{tpu_custom_call.1} parent=0
    #allocation3 [shape = 'u8[8192]{0}', space=vmem, size = 0x2000, scoped, tag = 'input window, operand 0, single buffered']
    #allocation4 [shape = 's32[1]{0}', space=sflag, size = 0x4, scoped, tag = 'scoped memory for tpu_custom_call.1']
    #allocation5 [shape = 's32[1]{0}', space=sflag, size = 0x4, scoped, tag = 'scoped memory for tpu_custom_call.1']
    #allocation6 [shape = 'u8[2048]{0}', space=vmem, size = 0x800, scoped, tag = 'input window, operand 1, single buffered']
    #allocation7 [shape = 's32[1]{0}', space=sflag, size = 0x4, scoped, tag = 'scoped memory for tpu_custom_call.1']
    #allocation8 [shape = 'u8[32768]{0}', space=vmem, size = 0x8000, scoped, tag = 'input window, operand 2, single buffered']
    #allocation9 [shape = 'u8[8192]{0}', space=vmem, size = 0x2000, scoped, tag = 'output window, operand 0, single buffered']
    %10 = vsyncpa [#allocation4], 0
    %11 = vsyncpa [#allocation7], 0
    %12 = vsyncpa [#allocation5], 0
    // Predicated region
    $region2: #{tpu_custom_call.1} parent=1 // pred_check
      _
    $region3: #{tpu_custom_call.1} parent=1 // pred_check_branch
      %14 = sbr.rel (0) target = $region5
    $region4: #{tpu_custom_call.1} parent=1 // pred_region
      %s16 = ssub.s32 256, 256
      %17 = vsyncadd [#allocation4], %s16
      %s19 = sshll.u32 [#allocation3], 4
      %s20 = int_to_ptr.vmem [resolvable:$true] %s19
      %22 = dma.hbm_to_vmem [thread:$0]  %s0, 256, %s20, [#allocation4]
    $region5: #{tpu_custom_call.1} parent=1 // pred_fallthru
      _
    // Predicated region
    $region6: #{tpu_custom_call.1} parent=1 // pred_check
      _
    $region7: #{tpu_custom_call.1} parent=1 // pred_check_branch
      %24 = sbr.rel (0) target = $region9
    $region8: #{tpu_custom_call.1} parent=1 // pred_region
      %s26 = ssub.s32 64, 64
      %27 = vsyncadd [#allocation7], %s26
      %s29 = sshll.u32 [#allocation6], 4
      %s30 = int_to_ptr.vmem [resolvable:$true] %s29
      %32 = dma.hbm_to_vmem [thread:$0]  %s1, 64, %s30, [#allocation7]
    $region9: #{tpu_custom_call.1} parent=1 // pred_fallthru
      _
    // Predicated region
    $region10: #{tpu_custom_call.1} parent=1 // pred_check
      _
    $region11: #{tpu_custom_call.1} parent=1 // pred_check_branch
      %34 = sbr.rel (0) target = $region13
    $region12: #{tpu_custom_call.1} parent=1 // pred_region
      %s36 = ssub.s32 1024, 1024
      %37 = vsyncadd [#allocation7], %s36
      %s38 = sshll.u32 [#allocation8], 4
      %s39 = int_to_ptr.vmem [resolvable:$true] %s38
      %44 = dma.hbm_to_vmem [thread:$0]  %s2, 1024, %s39, [#allocation7], 512, 512, 32
    $region13: #{tpu_custom_call.1} parent=1 // pred_fallthru
      _
    // Predicated region
    $region14: #{tpu_custom_call.1} parent=1 // pred_check
      _
    $region15: #{tpu_custom_call.1} parent=1 // pred_check_branch
      %46 = sbr.rel (0) target = $region17
    $region16: #{tpu_custom_call.1} parent=1 // pred_region
      %47 = dma.done [#allocation4], 256
    $region17: #{tpu_custom_call.1} parent=1 // pred_fallthru
      _
    // Predicated region
    $region18: #{tpu_custom_call.1} parent=1 // pred_check
      _
    $region19: #{tpu_custom_call.1} parent=1 // pred_check_branch
      %49 = sbr.rel (0) target = $region21
    $region20: #{tpu_custom_call.1} parent=1 // pred_region
      %50 = dma.done [#allocation7], 64
    $region21: #{tpu_custom_call.1} parent=1 // pred_fallthru
      _
    // Predicated region
    $region22: #{tpu_custom_call.1} parent=1 // pred_check
      _
    $region23: #{tpu_custom_call.1} parent=1 // pred_check_branch
      %52 = sbr.rel (0) target = $region25
    $region24: #{tpu_custom_call.1} parent=1 // pred_region
      %53 = dma.done [#allocation7], 1024
    $region25: #{tpu_custom_call.1} parent=1 // pred_fallthru
      _
    %v55 = vld [vmem:[#allocation3] sm:$0xff]
    %v56 = vld [vmem:[#allocation3 + $0x8] sm:$0xff]
    %v58 = vcombine.high %v56, %v56
    %59 = vrot.lane.b32.xlu0 %v58, 17
    %v60 = vpop.permute.xlu0 %59
    %v63 = vcombine.high %v55, %v55
    %64 = vrot.lane.b32.xlu0 %v55, 17
    %v65 = vpop.permute.xlu0 %64
    %66 = vrot.lane.b32.xlu0 %v63, 17
    %v67 = vpop.permute.xlu0 %66
    %68 = vrot.lane.b32.xlu0 %v56, 17
    %v69 = vpop.permute.xlu0 %68
    %vm70 = vcmask 138240
    %v71 = vsel %vm70, %v65, %v67
    %v72 = vsel %vm70, %v67, %v69
    %v73 = vsel %vm70, %v69, %v60
    %v78 = vsel %vm70, %v60, %v65
    %v79 = vld [vmem:[#allocation8] ss:$8 sm:$0xf]
    %v81 = vlaneseq
    %v82 = vshrl.u32 %v81, 7
    %v83 = vsub.s32 0, %v82
    %v84 = vrot.slane %v79, %v83
    %v85 = vlaneseq
    %v86 = vshrl.u32 %v85, 7
    %v87 = vsub.s32 1, %v86
    %v88 = vrot.slane %v79, %v87
    %v89 = vlaneseq
    %v90 = vshrl.u32 %v89, 7
    %v91 = vsub.s32 2, %v90
    %v92 = vrot.slane %v79, %v91
    %v93 = vlaneseq
    %v94 = vshrl.u32 %v93, 7
    %v95 = vsub.s32 3, %v94
    %v96 = vrot.slane %v79, %v95
    %v101 = vmul.f32 %v78, %v84
    %v102 = vmul.f32 %v71, %v88
    %v103 = vmul.f32 %v72, %v92
    %v104 = vmul.f32 %v73, %v96
    %v105 = vpack.c.bf16 %v101, %v101
    %v106 = vpack.c.bf16 %v102, %v102
    %v107 = vpack.c.bf16 %v103, %v103
    %v108 = vpack.c.bf16 %v104, %v104
    %v113 = vunpack.c.l.b16 %v105
    %v114 = vunpack.c.l.b16 %v106
    %v115 = vunpack.c.l.b16 %v107
    %v116 = vunpack.c.l.b16 %v108
    %v117 = vpack.c.b16 %v114, %v113
    %v118 = vpack.c.b16 %v116, %v115
    %121 = vst [vmem:[#allocation2] sm:$0x33] %v117
    %122 = vst [vmem:[#allocation2 + $0x8] sm:$0x33] %v118
    %123 = vrot.lane.b32.xlu0 %v58, 16
    %v124 = vpop.permute.xlu0 %123
    %126 = vrot.lane.b32.xlu0 %v55, 16
    %v127 = vpop.permute.xlu0 %126
    %128 = vrot.lane.b32.xlu0 %v63, 16
    %v129 = vpop.permute.xlu0 %128
    %130 = vrot.lane.b32.xlu0 %v56, 16
    %v131 = vpop.permute.xlu0 %130
    %vm132 = vcmask 130048
    %v133 = vsel %vm132, %v127, %v129
    %v134 = vsel %vm132, %v129, %v131
    %v135 = vsel %vm132, %v131, %v124
    %v140 = vsel %vm132, %v124, %v127
    %s141 = scalar_lea.vmem [#allocation8], 1
    %v142 = vld [vmem:[%s141] ss:$8 sm:$0xf]
    %v144 = vlaneseq
    %v145 = vshrl.u32 %v144, 7
    %v146 = vsub.s32 0, %v145
    %v147 = vrot.slane %v142, %v146
    %v148 = vlaneseq
    %v149 = vshrl.u32 %v148, 7
    %v150 = vsub.s32 1, %v149
    %v151 = vrot.slane %v142, %v150
    %v152 = vlaneseq
    %v153 = vshrl.u32 %v152, 7
    %v154 = vsub.s32 2, %v153
    %v155 = vrot.slane %v142, %v154
    %v156 = vlaneseq
    %v157 = vshrl.u32 %v156, 7
    %v158 = vsub.s32 3, %v157
    %v159 = vrot.slane %v142, %v158
    %v164 = vmul.f32 %v140, %v147
    %v165 = vmul.f32 %v133, %v151
    %v166 = vmul.f32 %v134, %v155
    %v167 = vmul.f32 %v135, %v159
    %v168 = vpack.c.bf16 %v164, %v164
    %v169 = vpack.c.bf16 %v165, %v165
    %v170 = vpack.c.bf16 %v166, %v166
    %v171 = vpack.c.bf16 %v167, %v167
    %v176 = vunpack.c.l.b16 %v168
    %v177 = vunpack.c.l.b16 %v169
    %v178 = vunpack.c.l.b16 %v170
    %v179 = vunpack.c.l.b16 %v171
    %v180 = vpack.c.b16 %v177, %v176
    %v181 = vpack.c.b16 %v179, %v178
    %v182 = vrot.slane %v180, 6
    %v183 = vrot.slane %v181, 6
    %186 = vst [vmem:[#allocation2] sm:$0xcc] %v182
    %187 = vst [vmem:[#allocation2 + $0x8] sm:$0xcc] %v183
    %188 = vrot.lane.b32.xlu0 %v58, 15
    %v189 = vpop.permute.xlu0 %188
    %191 = vrot.lane.b32.xlu0 %v55, 15
    %v192 = vpop.permute.xlu0 %191
    %193 = vrot.lane.b32.xlu0 %v63, 15
    %v194 = vpop.permute.xlu0 %193
    %195 = vrot.lane.b32.xlu0 %v56, 15
    %v196 = vpop.permute.xlu0 %195
    %vm197 = vcmask 121856
    %v198 = vsel %vm197, %v192, %v194
    %v199 = vsel %vm197, %v194, %v196
    %v200 = vsel %vm197, %v196, %v189
    %v205 = vsel %vm197, %v189, %v192
    %s206 = scalar_lea.vmem [#allocation8], 2
    %v207 = vld [vmem:[%s206] ss:$8 sm:$0xf]
    %v209 = vlaneseq
    %v210 = vshrl.u32 %v209, 7
    %v211 = vsub.s32 0, %v210
    %v212 = vrot.slane %v207, %v211
    %v213 = vlaneseq
    %v214 = vshrl.u32 %v213, 7
    %v215 = vsub.s32 1, %v214
    %v216 = vrot.slane %v207, %v215
    %v217 = vlaneseq
    %v218 = vshrl.u32 %v217, 7
    %v219 = vsub.s32 2, %v218
    %v220 = vrot.slane %v207, %v219
    %v221 = vlaneseq
    %v222 = vshrl.u32 %v221, 7
    %v223 = vsub.s32 3, %v222
    %v224 = vrot.slane %v207, %v223
    %v229 = vmul.f32 %v205, %v212
    %v230 = vmul.f32 %v198, %v216
    %v231 = vmul.f32 %v199, %v220
    %v232 = vmul.f32 %v200, %v224
    %v233 = vpack.c.bf16 %v229, %v229
    %v234 = vpack.c.bf16 %v230, %v230
    %v235 = vpack.c.bf16 %v231, %v231
    %v236 = vpack.c.bf16 %v232, %v232
    %v241 = vunpack.c.l.b16 %v233
    %v242 = vunpack.c.l.b16 %v234
    %v243 = vunpack.c.l.b16 %v235
    %v244 = vunpack.c.l.b16 %v236
    %v245 = vpack.c.b16 %v242, %v241
    %v246 = vpack.c.b16 %v244, %v243
    %249 = vst [vmem:[#allocation2 + $0x10] sm:$0x33] %v245
    %250 = vst [vmem:[#allocation2 + $0x18] sm:$0x33] %v246
    %251 = vrot.lane.b32.xlu0 %v58, 1
    %v252 = vpop.permute.xlu0 %251
    %254 = vrot.lane.b32.xlu0 %v55, 1
    %v255 = vpop.permute.xlu0 %254
    %256 = vrot.lane.b32.xlu0 %v63, 1
    %v257 = vpop.permute.xlu0 %256
    %258 = vrot.lane.b32.xlu0 %v56, 1
    %v259 = vpop.permute.xlu0 %258
    %vm260 = vcmask 7168
    %v261 = vsel %vm260, %v255, %v257
    %v262 = vsel %vm260, %v257, %v259
    %v263 = vsel %vm260, %v259, %v252
    %v268 = vsel %vm260, %v252, %v255
    %s269 = scalar_lea.vmem [#allocation8], 3
    %v270 = vld [vmem:[%s269] ss:$8 sm:$0xf]
    %v272 = vlaneseq
    %v273 = vshrl.u32 %v272, 7
    %v274 = vsub.s32 0, %v273
    %v275 = vrot.slane %v270, %v274
    %v276 = vlaneseq
    %v277 = vshrl.u32 %v276, 7
    %v278 = vsub.s32 1, %v277
    %v279 = vrot.slane %v270, %v278
    %v280 = vlaneseq
    %v281 = vshrl.u32 %v280, 7
    %v282 = vsub.s32 2, %v281
    %v283 = vrot.slane %v270, %v282
    %v284 = vlaneseq
    %v285 = vshrl.u32 %v284, 7
    %v286 = vsub.s32 3, %v285
    %v287 = vrot.slane %v270, %v286
    %v292 = vmul.f32 %v268, %v275
    %v293 = vmul.f32 %v261, %v279
    %v294 = vmul.f32 %v262, %v283
    %v295 = vmul.f32 %v263, %v287
    %v296 = vpack.c.bf16 %v292, %v292
    %v297 = vpack.c.bf16 %v293, %v293
    %v298 = vpack.c.bf16 %v294, %v294
    %v299 = vpack.c.bf16 %v295, %v295
    %v304 = vunpack.c.l.b16 %v296
    %v305 = vunpack.c.l.b16 %v297
    %v306 = vunpack.c.l.b16 %v298
    %v307 = vunpack.c.l.b16 %v299
    %v308 = vpack.c.b16 %v305, %v304
    %v309 = vpack.c.b16 %v307, %v306
    %v310 = vrot.slane %v308, 6
    %v311 = vrot.slane %v309, 6
    %314 = vst [vmem:[#allocation2 + $0x10] sm:$0xcc] %v310
    %315 = vst [vmem:[#allocation2 + $0x18] sm:$0xcc] %v311
    %s316 = scalar_lea.vmem [#allocation8], 4
    %v317 = vld [vmem:[%s316] ss:$8 sm:$0xf]
    %v319 = vlaneseq
    %v320 = vshrl.u32 %v319, 7
    %v321 = vsub.s32 0, %v320
    %v322 = vrot.slane %v317, %v321
    %v323 = vlaneseq
    %v324 = vshrl.u32 %v323, 7
    %v325 = vsub.s32 1, %v324
    %v326 = vrot.slane %v317, %v325
    %v327 = vlaneseq
    %v328 = vshrl.u32 %v327, 7
    %v329 = vsub.s32 2, %v328
    %v330 = vrot.slane %v317, %v329
    %v331 = vlaneseq
    %v332 = vshrl.u32 %v331, 7
    %v333 = vsub.s32 3, %v332
    %v334 = vrot.slane %v317, %v333
    %v335 = vcombine.low %v322, %v326
    %v336 = vcombine.low %v330, %v334
    %v339 = vmul.f32 %v55, %v335
    %v340 = vmul.f32 %v56, %v336
    %v343 = vcombine.high %v339, %v339
    %v344 = vcombine.high %v340, %v340
    %v347 = vpack.c.bf16 %v339, %v339
    %v348 = vpack.c.bf16 %v343, %v343
    %v349 = vpack.c.bf16 %v340, %v340
    %v350 = vpack.c.bf16 %v344, %v344
    %v355 = vunpack.c.l.b16 %v347
    %v356 = vunpack.c.l.b16 %v348
    %v357 = vunpack.c.l.b16 %v349
    %v358 = vunpack.c.l.b16 %v350
    %v359 = vpack.c.b16 %v356, %v355
    %v360 = vpack.c.b16 %v358, %v357
    %363 = vst [vmem:[#allocation2 + $0x20] sm:$0x33] %v359
    %364 = vst [vmem:[#allocation2 + $0x28] sm:$0x33] %v360
    %365 = vrot.lane.b32.xlu0 %v55, 127
    %v366 = vpop.permute.xlu0 %365
    %367 = vrot.lane.b32.xlu0 %v63, 127
    %v368 = vpop.permute.xlu0 %367
    %369 = vrot.lane.b32.xlu0 %v56, 127
    %v370 = vpop.permute.xlu0 %369
    %371 = vrot.lane.b32.xlu0 %v58, 127
    %v372 = vpop.permute.xlu0 %371
    %vm373 = vcmask 1039360
    %v374 = vsel %vm373, %v366, %v368
    %v375 = vsel %vm373, %v368, %v370
    %v376 = vsel %vm373, %v370, %v372
    %v382 = vsel %vm373, %v372, %v366
    %s383 = scalar_lea.vmem [#allocation8], 5
    %v384 = vld [vmem:[%s383] ss:$8 sm:$0xf]
    %v386 = vlaneseq
    %v387 = vshrl.u32 %v386, 7
    %v388 = vsub.s32 0, %v387
    %v389 = vrot.slane %v384, %v388
    %v390 = vlaneseq
    %v391 = vshrl.u32 %v390, 7
    %v392 = vsub.s32 1, %v391
    %v393 = vrot.slane %v384, %v392
    %v394 = vlaneseq
    %v395 = vshrl.u32 %v394, 7
    %v396 = vsub.s32 2, %v395
    %v397 = vrot.slane %v384, %v396
    %v398 = vlaneseq
    %v399 = vshrl.u32 %v398, 7
    %v400 = vsub.s32 3, %v399
    %v401 = vrot.slane %v384, %v400
    %v406 = vmul.f32 %v374, %v389
    %v407 = vmul.f32 %v375, %v393
    %v408 = vmul.f32 %v376, %v397
    %v409 = vmul.f32 %v382, %v401
    %v410 = vpack.c.bf16 %v406, %v406
    %v411 = vpack.c.bf16 %v407, %v407
    %v412 = vpack.c.bf16 %v408, %v408
    %v413 = vpack.c.bf16 %v409, %v409
    %v418 = vunpack.c.l.b16 %v410
    %v419 = vunpack.c.l.b16 %v411
    %v420 = vunpack.c.l.b16 %v412
    %v421 = vunpack.c.l.b16 %v413
    %v422 = vpack.c.b16 %v419, %v418
    %v423 = vpack.c.b16 %v421, %v420
    %v424 = vrot.slane %v422, 6
    %v425 = vrot.slane %v423, 6
    %428 = vst [vmem:[#allocation2 + $0x20] sm:$0xcc] %v424
    %429 = vst [vmem:[#allocation2 + $0x28] sm:$0xcc] %v425
    %430 = vrot.lane.b32.xlu0 %v55, 113
    %v431 = vpop.permute.xlu0 %430
    %432 = vrot.lane.b32.xlu0 %v63, 113
    %v433 = vpop.permute.xlu0 %432
    %434 = vrot.lane.b32.xlu0 %v56, 113
    %v435 = vpop.permute.xlu0 %434
    %436 = vrot.lane.b32.xlu0 %v58, 113
    %v437 = vpop.permute.xlu0 %436
    %vm438 = vcmask 924672
    %v439 = vsel %vm438, %v431, %v433
    %v440 = vsel %vm438, %v433, %v435
    %v441 = vsel %vm438, %v435, %v437
    %v447 = vsel %vm438, %v437, %v431
    %s448 = scalar_lea.vmem [#allocation8], 6
    %v449 = vld [vmem:[%s448] ss:$8 sm:$0xf]
    %v451 = vlaneseq
    %v452 = vshrl.u32 %v451, 7
    %v453 = vsub.s32 0, %v452
    %v454 = vrot.slane %v449, %v453
    %v455 = vlaneseq
    %v456 = vshrl.u32 %v455, 7
    %v457 = vsub.s32 1, %v456
    %v458 = vrot.slane %v449, %v457
    %v459 = vlaneseq
    %v460 = vshrl.u32 %v459, 7
    %v461 = vsub.s32 2, %v460
    %v462 = vrot.slane %v449, %v461
    %v463 = vlaneseq
    %v464 = vshrl.u32 %v463, 7
    %v465 = vsub.s32 3, %v464
    %v466 = vrot.slane %v449, %v465
    %v471 = vmul.f32 %v439, %v454
    %v472 = vmul.f32 %v440, %v458
    %v473 = vmul.f32 %v441, %v462
    %v474 = vmul.f32 %v447, %v466
    %v475 = vpack.c.bf16 %v471, %v471
    %v476 = vpack.c.bf16 %v472, %v472
    %v477 = vpack.c.bf16 %v473, %v473
    %v478 = vpack.c.bf16 %v474, %v474
    %v483 = vunpack.c.l.b16 %v475
    %v484 = vunpack.c.l.b16 %v476
    %v485 = vunpack.c.l.b16 %v477
    %v486 = vunpack.c.l.b16 %v478
    %v487 = vpack.c.b16 %v484, %v483
    %v488 = vpack.c.b16 %v486, %v485
    %491 = vst [vmem:[#allocation2 + $0x30] sm:$0x33] %v487
    %492 = vst [vmem:[#allocation2 + $0x38] sm:$0x33] %v488
    %493 = vrot.lane.b32.xlu0 %v55, 112
    %v494 = vpop.permute.xlu0 %493
    %495 = vrot.lane.b32.xlu0 %v63, 112
    %v496 = vpop.permute.xlu0 %495
    %497 = vrot.lane.b32.xlu0 %v56, 112
    %v498 = vpop.permute.xlu0 %497
    %499 = vrot.lane.b32.xlu0 %v58, 112
    %v500 = vpop.permute.xlu0 %499
    %vm501 = vcmask 916480
    %v502 = vsel %vm501, %v494, %v496
    %v503 = vsel %vm501, %v496, %v498
    %v504 = vsel %vm501, %v498, %v500
    %v510 = vsel %vm501, %v500, %v494
    %s511 = scalar_lea.vmem [#allocation8], 7
    %v512 = vld [vmem:[%s511] ss:$8 sm:$0xf]
    %v514 = vlaneseq
    %v515 = vshrl.u32 %v514, 7
    %v516 = vsub.s32 0, %v515
    %v517 = vrot.slane %v512, %v516
    %v518 = vlaneseq
    %v519 = vshrl.u32 %v518, 7
    %v520 = vsub.s32 1, %v519
    %v521 = vrot.slane %v512, %v520
    %v522 = vlaneseq
    %v523 = vshrl.u32 %v522, 7
    %v524 = vsub.s32 2, %v523
    %v525 = vrot.slane %v512, %v524
    %v526 = vlaneseq
    %v527 = vshrl.u32 %v526, 7
    %v528 = vsub.s32 3, %v527
    %v529 = vrot.slane %v512, %v528
    %v534 = vmul.f32 %v502, %v517
    %v535 = vmul.f32 %v503, %v521
    %v536 = vmul.f32 %v504, %v525
    %v537 = vmul.f32 %v510, %v529
    %v538 = vpack.c.bf16 %v534, %v534
    %v539 = vpack.c.bf16 %v535, %v535
    %v540 = vpack.c.bf16 %v536, %v536
    %v541 = vpack.c.bf16 %v537, %v537
    %v546 = vunpack.c.l.b16 %v538
    %v547 = vunpack.c.l.b16 %v539
    %v548 = vunpack.c.l.b16 %v540
    %v549 = vunpack.c.l.b16 %v541
    %v550 = vpack.c.b16 %v547, %v546
    %v551 = vpack.c.b16 %v549, %v548
    %v552 = vrot.slane %v550, 6
    %v553 = vrot.slane %v551, 6
    %556 = vst [vmem:[#allocation2 + $0x30] sm:$0xcc] %v552
    %557 = vst [vmem:[#allocation2 + $0x38] sm:$0xcc] %v553
    %558 = vrot.lane.b32.xlu0 %v55, 111
    %v559 = vpop.permute.xlu0 %558
    %560 = vrot.lane.b32.xlu0 %v63, 111
    %v561 = vpop.permute.xlu0 %560
    %562 = vrot.lane.b32.xlu0 %v56, 111
    %v563 = vpop.permute.xlu0 %562
    %564 = vrot.lane.b32.xlu0 %v58, 111
    %v565 = vpop.permute.xlu0 %564
    %vm566 = vcmask 908288
    %v567 = vsel %vm566, %v559, %v561
    %v568 = vsel %vm566, %v561, %v563
    %v569 = vsel %vm566, %v563, %v565
    %v575 = vsel %vm566, %v565, %v559
    %s576 = scalar_lea.vmem [#allocation8], 32
    %v577 = vld [vmem:[%s576] ss:$8 sm:$0xf]
    %v579 = vlaneseq
    %v580 = vshrl.u32 %v579, 7
    %v581 = vsub.s32 0, %v580
    %v582 = vrot.slane %v577, %v581
    %v583 = vlaneseq
    %v584 = vshrl.u32 %v583, 7
    %v585 = vsub.s32 1, %v584
    %v586 = vrot.slane %v577, %v585
    %v587 = vlaneseq
    %v588 = vshrl.u32 %v587, 7
    %v589 = vsub.s32 2, %v588
    %v590 = vrot.slane %v577, %v589
    %v591 = vlaneseq
    %v592 = vshrl.u32 %v591, 7
    %v593 = vsub.s32 3, %v592
    %v594 = vrot.slane %v577, %v593
    %v599 = vmul.f32 %v567, %v582
    %v600 = vmul.f32 %v568, %v586
    %v601 = vmul.f32 %v569, %v590
    %v602 = vmul.f32 %v575, %v594
    %v603 = vpack.c.bf16 %v599, %v599
    %v604 = vpack.c.bf16 %v600, %v600
    %v605 = vpack.c.bf16 %v601, %v601
    %v606 = vpack.c.bf16 %v602, %v602
    %v611 = vunpack.c.l.b16 %v603
    %v612 = vunpack.c.l.b16 %v604
    %v613 = vunpack.c.l.b16 %v605
    %v614 = vunpack.c.l.b16 %v606
    %v615 = vpack.c.b16 %v612, %v611
    %v616 = vpack.c.b16 %v614, %v613
    %619 = vst [vmem:[#allocation2 + $0x40] sm:$0x33] %v615
    %620 = vst [vmem:[#allocation2 + $0x48] sm:$0x33] %v616
    %v621 = vld [vmem:[#allocation6] sm:$0xf]
    %v622 = vld [vmem:[#allocation2] sm:$0xff]
    %v623 = vld [vmem:[#allocation2 + $0x8] sm:$0xff]
    %v624 = vld [vmem:[#allocation2 + $0x10] sm:$0xff]
    %v625 = vld [vmem:[#allocation2 + $0x18] sm:$0xff]
    %v626 = vld [vmem:[#allocation2 + $0x20] sm:$0xff]
    %v627 = vld [vmem:[#allocation2 + $0x28] sm:$0xff]
    %v628 = vld [vmem:[#allocation2 + $0x30] sm:$0xff]
    %v629 = vld [vmem:[#allocation2 + $0x38] sm:$0xff]
    %v630 = vld [vmem:[#allocation2 + $0x40] sm:$0x33]
    %v631 = vld [vmem:[#allocation2 + $0x48] sm:$0x33]
    %v642 = vunpack.c.l.b16 %v622
    %v643 = vunpack.c.h.b16 %v622
    %v644 = vunpack.c.l.b16 %v623
    %v645 = vunpack.c.h.b16 %v623
    %v646 = vunpack.c.l.b16 %v624
    %v647 = vunpack.c.h.b16 %v624
    %v648 = vunpack.c.l.b16 %v625
    %v649 = vunpack.c.h.b16 %v625
    %v650 = vunpack.c.l.b16 %v626
    %v651 = vunpack.c.h.b16 %v626
    %v652 = vunpack.c.l.b16 %v627
    %v653 = vunpack.c.h.b16 %v627
    %v654 = vunpack.c.l.b16 %v628
    %v655 = vunpack.c.h.b16 %v628
    %v656 = vunpack.c.l.b16 %v629
    %v657 = vunpack.c.h.b16 %v629
    %v658 = vunpack.c.l.b16 %v630
    %v659 = vunpack.c.h.b16 %v630
    %v660 = vunpack.c.l.b16 %v631
    %v661 = vunpack.c.h.b16 %v631
    %v662 = vpack.c.b16 %v646, %v642
    %v663 = vpack.c.b16 %v647, %v643
    %v664 = vpack.c.b16 %v648, %v644
    %v665 = vpack.c.b16 %v649, %v645
    %v666 = vpack.c.b16 %v654, %v650
    %v667 = vpack.c.b16 %v655, %v651
    %v668 = vpack.c.b16 %v656, %v652
    %v669 = vpack.c.b16 %v657, %v653
    %v670 = vpack.c.b16 %v658, %v658
    %v671 = vpack.c.b16 %v659, %v659
    %v672 = vpack.c.b16 %v660, %v660
    %v673 = vpack.c.b16 %v661, %v661
    %vm682 = vcmask 293888
    %v684 = vsel %vm682, %v621, 0
    %vm686 = vcmask 1041408
    %v688 = vsel %vm686, %v670, 0
    %v691 = vsel %vm686, %v671, 0
    %v694 = vsel %vm686, %v672, 0
    %v697 = vsel %vm686, %v673, 0
    %699 = vmatprep.subr.bf16.mxu0 0
    %700 = vmatpush1.bf16.msra.mxu0 0
    %701 = vmatprep.subr.bf16.mxu0 0
    %702 = vmatpush1.bf16.msra.mxu0 0
    %703 = vmatprep.subr.bf16.mxu0 0
    %704 = vmatpush1.bf16.msra.mxu0 0
    %705 = vmatprep.subr.bf16.mxu0 0
    %706 = vmatpush1.bf16.msra.mxu0 0
    %707 = vmatprep.subr.bf16.mxu0 0
    %708 = vmatpush1.bf16.msra.mxu0 0
    %709 = vmatprep.subr.bf16.mxu0 %v691
    %710 = vmatpush1.bf16.msra.mxu0 %v688
    %711 = vmatprep.subr.bf16.mxu0 %v667
    %712 = vmatpush1.bf16.msra.mxu0 %v666
    %713 = vmatprep.subr.bf16.mxu0 %v663
    %714 = vmatpush1.bf16.msra.mxu0 %v662
    %715 = vmatprep.subr.bf16.mxu0 0
    %716 = vmatpush2.bf16.msra.mxu0 0
    %717 = vmatprep.subr.bf16.mxu0 0
    %718 = vmatpush2.bf16.msra.mxu0 0
    %719 = vmatprep.subr.bf16.mxu0 0
    %720 = vmatpush2.bf16.msra.mxu0 0
    %721 = vmatprep.subr.bf16.mxu0 0
    %722 = vmatpush2.bf16.msra.mxu0 0
    %723 = vmatprep.subr.bf16.mxu0 0
    %724 = vmatpush2.bf16.msra.mxu0 0
    %725 = vmatprep.subr.bf16.mxu0 0
    %726 = vmatpush2.bf16.msra.mxu0 0
    %727 = vmatprep.subr.bf16.mxu0 0
    %728 = vmatpush2.bf16.msra.mxu0 0
    %729 = vmatprep.subr.bf16.mxu0 0
    %730 = vmatpush2.bf16.msra.mxu0 0
    %731 = vmatprep.mubr.bf16.mxu0 0
    %732 = vmatmul.mubr.bf16.gmra.mxu0 %v684
    %v733 = vpop.f32.mrf.mxu0
    %v734 = vadd.f32 0.0, %v733
    %v735 = vpop.f32.mrf.mxu0
    %v736 = vadd.f32 0.0, %v735
    %v737 = vpop.f32.mrf.mxu0
    %v738 = vpop.f32.mrf.mxu0
    %739 = vdwg.mxu0
    %740 = vmatprep.subr.bf16.mxu0 0
    %741 = vmatpush1.bf16.msra.mxu0 0
    %742 = vmatprep.subr.bf16.mxu0 0
    %743 = vmatpush1.bf16.msra.mxu0 0
    %744 = vmatprep.subr.bf16.mxu0 0
    %745 = vmatpush1.bf16.msra.mxu0 0
    %746 = vmatprep.subr.bf16.mxu0 0
    %747 = vmatpush1.bf16.msra.mxu0 0
    %748 = vmatprep.subr.bf16.mxu0 0
    %749 = vmatpush1.bf16.msra.mxu0 0
    %750 = vmatprep.subr.bf16.mxu0 %v697
    %751 = vmatpush1.bf16.msra.mxu0 %v694
    %752 = vmatprep.subr.bf16.mxu0 %v669
    %753 = vmatpush1.bf16.msra.mxu0 %v668
    %754 = vmatprep.subr.bf16.mxu0 %v665
    %755 = vmatpush1.bf16.msra.mxu0 %v664
    %756 = vmatprep.subr.bf16.mxu0 0
    %757 = vmatpush2.bf16.msra.mxu0 0
    %758 = vmatprep.subr.bf16.mxu0 0
    %759 = vmatpush2.bf16.msra.mxu0 0
    %760 = vmatprep.subr.bf16.mxu0 0
    %761 = vmatpush2.bf16.msra.mxu0 0
    %762 = vmatprep.subr.bf16.mxu0 0
    %763 = vmatpush2.bf16.msra.mxu0 0
    %764 = vmatprep.subr.bf16.mxu0 0
    %765 = vmatpush2.bf16.msra.mxu0 0
    %766 = vmatprep.subr.bf16.mxu0 0
    %767 = vmatpush2.bf16.msra.mxu0 0
    %768 = vmatprep.subr.bf16.mxu0 0
    %769 = vmatpush2.bf16.msra.mxu0 0
    %770 = vmatprep.subr.bf16.mxu0 0
    %771 = vmatpush2.bf16.msra.mxu0 0
    %772 = vmatprep.mubr.bf16.mxu0 0
    %773 = vmatmul.mubr.bf16.gmra.mxu0 %v684
    %v774 = vpop.f32.mrf.mxu0
    %v775 = vadd.f32 0.0, %v774
    %v776 = vpop.f32.mrf.mxu0
    %v777 = vadd.f32 0.0, %v776
    %v778 = vpop.f32.mrf.mxu0
    %v779 = vpop.f32.mrf.mxu0
    %780 = vdwg.mxu0
    %v781 = vadd.f32 %v734, %v736
    %v782 = vadd.f32 %v781, %v775
    %v783 = vadd.f32 %v782, %v777
    %784 = vadd.xlane.f32.xlu0 %v783
    %v785 = vpop.xlane.xlu0 %784
    %786 = vst.msk [vmem:[%s4] sm:$0xff] %vm260, %v785
    %v787 = vmul.f32 %v734, %v734
    %v788 = vmul.f32 %v736, %v736
    %v789 = vmul.f32 %v775, %v775
    %v790 = vmul.f32 %v777, %v777
    %v791 = vadd.f32 %v787, %v788
    %v792 = vadd.f32 %v791, %v789
    %v793 = vadd.f32 %v792, %v790
    %794 = vadd.xlane.f32.xlu0 %v793
    %v795 = vpop.xlane.xlu0 %794
    %vm796 = vcmask 15368
    %797 = vst.msk [vmem:[%s4] sm:$0xff] %vm796, %v795
    %v798 = vpack.c.bf16 %v734, %v734
    %v799 = vpack.c.bf16 %v736, %v736
    %v800 = vpack.c.bf16 %v775, %v775
    %v801 = vpack.c.bf16 %v777, %v777
    %v806 = vunpack.c.l.b16 %v798
    %v807 = vunpack.c.l.b16 %v799
    %v808 = vunpack.c.l.b16 %v800
    %v809 = vunpack.c.l.b16 %v801
    %v810 = vpack.c.b16 %v807, %v806
    %v811 = vpack.c.b16 %v809, %v808
    %814 = vst [vmem:[#allocation9] sm:$0xff] %v810
    %815 = vst [vmem:[#allocation9 + $0x8] sm:$0xff] %v811
    // Predicated region
    $region26: #{tpu_custom_call.1} parent=1 // pred_check
      _
    $region27: #{tpu_custom_call.1} parent=1 // pred_check_branch
      %817 = sbr.rel (0) target = $region29
    $region28: #{tpu_custom_call.1} parent=1 // pred_region
      %s819 = ssub.s32 256, 256
      %820 = vsyncadd [#allocation5], %s819
      %s822 = sshll.u32 [#allocation9], 4
      %s823 = int_to_ptr.vmem [resolvable:$true] %s822
      %825 = dma.vmem_to_hbm [thread:$0]  %s823, 256, %s3, [#allocation5]
    $region29: #{tpu_custom_call.1} parent=1 // pred_fallthru
      _
    // Predicated region
    $region30: #{tpu_custom_call.1} parent=1 // pred_check
      _
    $region31: #{tpu_custom_call.1} parent=1 // pred_check_branch
      %827 = sbr.rel (0) target = $region33
    $region32: #{tpu_custom_call.1} parent=1 // pred_region
      _
    $region33: #{tpu_custom_call.1} parent=1 // pred_fallthru
      _
    // Predicated region
    $region34: #{tpu_custom_call.1} parent=1 // pred_check
      _
    $region35: #{tpu_custom_call.1} parent=1 // pred_check_branch
      %829 = sbr.rel (0) target = $region37
    $region36: #{tpu_custom_call.1} parent=1 // pred_region
      %830 = dma.done [#allocation5], 256
    $region37: #{tpu_custom_call.1} parent=1 // pred_fallthru
      _
    // Predicated region
    $region38: #{tpu_custom_call.1} parent=1 // pred_check
      _
    $region39: #{tpu_custom_call.1} parent=1 // pred_check_branch
      %832 = sbr.rel (0) target = $region41
    $region40: #{tpu_custom_call.1} parent=1 // pred_region
      _
    $region41: #{tpu_custom_call.1} parent=1 // pred_fallthru
      _
    %833 = vsyncpa [#allocation4], 1
    %834 = vsyncpa [#allocation7], 1
    %835 = vsyncpa [#allocation5], 1

</llo_original>
